<compile_context>
chip_gen: v6e
topology: v6e:2x2x1
jax: 0.10.0
libtpu: 0.0.40
codegen_flags: <defaults>
</compile_context>

<pallas_src>
from copy import copy

import jax
import jax.numpy as jnp
from jax.experimental import pallas as pl
from jax.experimental.pallas import tpu as pltpu

_LANES = 128
_SUBLANES = 8
_TARGET_BLOCK_BYTES = 1 << 20   # ~1 MiB of DMA per input per grid step
_MAX_TILE_ROWS = 8192           # cap so in-kernel f32 temporaries stay modest
_SMALL_N = 1 << 20              # below this, plain fused XLA reduction wins


def _num_tensorcores_per_chip():
    """TensorCores addressable by one pallas_call grid (megacore split)."""
    try:
        kind = jax.devices()[0].device_kind.lower()
    except Exception:
        return 1
    if "v7" in kind:
        return 2                        # v7x: 2 TensorCores per chip
    if "lite" in kind or "v6" in kind or "v5e" in kind:
        return 1                        # v5e / v6e: single TensorCore
    if "v4" in kind or "v5" in kind:
        return 2                        # v4 / v5p megacore
    return 1


# ----------------------------------------------------------------------------
# Pallas kernel: per-core partial sums of |pred-gt| and (pred-gt)^2.
# Grid = (core, tile); axis 1 is the reduction axis, axis 0 is parallel.
# Partial sums accumulate in a (2,8,128) VMEM scratch; the (1,2,8,128) output
# block (indexed only by the core axis) is written once, on the last k step.
# ----------------------------------------------------------------------------
def _make_loss_sums_kernel(rows, tile_rows, tiles_per_core, needs_mask):
    t8 = tile_rows // _SUBLANES

    def accum(acc_ref, d):
        # Sublane-preserving VPU tree reduce: one vreg per statistic.
        acc_ref[0, :, :] += jnp.sum(
            jnp.abs(d).reshape(t8, _SUBLANES, _LANES), axis=0)
        acc_ref[1, :, :] += jnp.sum(
            (d * d).reshape(t8, _SUBLANES, _LANES), axis=0)

    def kernel(pred_ref, gt_ref, out_ref, acc_ref):
        c = pl.program_id(0)
        k = pl.program_id(1)

        @pl.when(k == 0)
        def _():
            acc_ref[...] = jnp.zeros_like(acc_ref)

        d = pred_ref[...].astype(jnp.float32) - gt_ref[...].astype(jnp.float32)

        if needs_mask:
            row0 = (c * tiles_per_core + k) * tile_rows

            @pl.when(row0 + tile_rows <= rows)   # interior tile: mask-free
            def _():
                accum(acc_ref, d)

            @pl.when(row0 + tile_rows > rows)    # boundary / clamped tile only
            def _():
                local = jax.lax.broadcasted_iota(
                    jnp.int32, (tile_rows, _LANES), 0)
                accum(acc_ref, jnp.where(local + row0 < rows, d, 0.0))
        else:
            accum(acc_ref, d)

        @pl.when(k == tiles_per_core - 1)
        def _():
            out_ref[0] = acc_ref[...]

    return kernel


def _loss_sums_pallas_impl(pred, gt):
    """(mean |pred-gt|, mean (pred-gt)^2), computed in one Pallas HBM pass."""
    assert pred.shape == gt.shape
    n = pred.size

    # Flatten; zero-pad only up to a multiple of 128 lanes (and at least one
    # full 8x128 tile).  Zero pads contribute nothing to either sum.
    x = pred.reshape(-1)
    y = gt.reshape(-1)
    padded = max(_SUBLANES * _LANES, pl.cdiv(n, _LANES) * _LANES)
    if padded != n:
        x = jnp.pad(x, (0, padded - n))
        y = jnp.pad(y, (0, padded - n))
    x = x.reshape(-1, _LANES)
    y = y.reshape(-1, _LANES)

    rows = x.shape[0]                                    # >= 8

    # Dtype-aware tile: keep ~1 MiB of DMA per input block regardless of dtype.
    itemsize = max(pred.dtype.itemsize, gt.dtype.itemsize)
    target_rows = min(_MAX_TILE_ROWS,
                      max(_SUBLANES, _TARGET_BLOCK_BYTES // (_LANES * itemsize)))
    target_rows = (target_rows // _SUBLANES) * _SUBLANES
    tile_rows = min(target_rows, (rows // _SUBLANES) * _SUBLANES)

    ncores = _num_tensorcores_per_chip()
    num_tiles = pl.cdiv(rows, tile_rows)
    tiles_per_core = pl.cdiv(num_tiles, ncores)
    needs_mask = (ncores * tiles_per_core * tile_rows) != rows

    def in_map(c, k):
        # Clamp so logical tiles past the end re-read the last valid block
        # (their contribution is fully masked to zero in the kernel).
        return (jnp.minimum(c * tiles_per_core + k, num_tiles - 1), 0)

    partials = pl.pallas_call(
        _make_loss_sums_kernel(rows, tile_rows, tiles_per_core, needs_mask),
        out_shape=jax.ShapeDtypeStruct((ncores, 2, _SUBLANES, _LANES),
                                       jnp.float32),
        grid_spec=pltpu.PrefetchScalarGridSpec(
            num_scalar_prefetch=0,
            grid=(ncores, tiles_per_core),
            in_specs=[
                pl.BlockSpec((tile_rows, _LANES), in_map),
                pl.BlockSpec((tile_rows, _LANES), in_map),
            ],
            out_specs=pl.BlockSpec((1, 2, _SUBLANES, _LANES),
                                   lambda c, k: (c, 0, 0, 0)),
            scratch_shapes=[pltpu.VMEM((2, _SUBLANES, _LANES), jnp.float32)],
        ),
        compiler_params=pltpu.CompilerParams(
            dimension_semantics=("parallel", "arbitrary")),
    )(x, y)

    sums = jnp.sum(partials, axis=(0, 2, 3))             # (2,)
    return sums[0] / n, sums[1] / n


def _loss_sums_small_impl(pred, gt):
    d = pred.astype(jnp.float32) - gt.astype(jnp.float32)
    return jnp.mean(jnp.abs(d)), jnp.mean(d * d)


_loss_sums_pallas = jax.jit(_loss_sums_pallas_impl)
_loss_sums_small = jax.jit(_loss_sums_small_impl)


def loss_sums(pred, gt, *, force_pallas=False):
    """(mean |pred-gt|, mean (pred-gt)^2); both stats from a single pass."""
    if force_pallas or pred.size >= _SMALL_N:
        return _loss_sums_pallas(pred, gt)
    # Tiny tensors: kernel launch + pad/reshape overhead dominates; one fused
    # XLA reduction is strictly faster there.
    return _loss_sums_small(pred, gt)


# ----------------------------------------------------------------------------
# MultiLoss combinator — faithful port of the given PyTorch code (host logic).
# ----------------------------------------------------------------------------
class MultiLoss:
    """Easily combinable losses (also keep track of individual loss values):
        loss = MyLoss1() + 0.1*MyLoss2()
    """

    def __init__(self):
        self._alpha = 1
        self._loss2 = None

    def compute_loss(self, *args, **kwargs):
        raise NotImplementedError()

    def get_name(self):
        raise NotImplementedError()

    def __mul__(self, alpha):
        assert isinstance(alpha, (int, float))
        res = copy(self)
        res._alpha = alpha
        return res
    __rmul__ = __mul__

    def __add__(self, loss2):
        assert isinstance(loss2, MultiLoss)
        res = cur = copy(self)
        while cur._loss2 is not None:
            cur = cur._loss2
        cur._loss2 = loss2
        return res

    def __repr__(self):
        name = self.get_name()
        if self._alpha != 1:
            name = f'{self._alpha:g}*{name}'
        if self._loss2:
            name = f'{name} + {self._loss2}'
        return name

    def forward(self, *args, **kwargs):
        loss = self.compute_loss(*args, **kwargs)
        if isinstance(loss, tuple) and len(loss) == 2:
            loss, details = loss
            monitoring = None
        elif isinstance(loss, tuple) and len(loss) == 3:
            loss, details, monitoring = loss
        elif loss.ndim == 0:
            details = {self.get_name(): float(loss)}
        else:
            details = {}
        loss = loss * self._alpha
        if self._loss2:
            # NOTE: faithful to the given code — after unpacking, `loss` is a
            # scalar (not a tuple), so these branches never fire and the
            # chained loss is not added (exact semantics reproduction).
            if isinstance(loss, tuple) and len(loss) == 2:
                loss2, details2 = self._loss2(*args, **kwargs)
                loss = loss + loss2
                details |= details2
                monitoring = None
            elif isinstance(loss, tuple) and len(loss) == 3:
                loss2, details2, monitoring2 = self._loss2(*args, **kwargs)
                loss = loss + loss2
                details |= details2
                monitoring |= monitoring2
        return (loss, details, monitoring)

    # nn.Module's __call__ dispatches to forward
    def __call__(self, *args, **kwargs):
        return self.forward(*args, **kwargs)


class L1Loss(MultiLoss):
    def get_name(self):
        return 'L1Loss'

    def compute_loss(self, pred, gt):
        l1_mean, _ = loss_sums(pred, gt)
        # keep jnp scalar in details (no float() -> no device->host sync)
        return l1_mean, {self.get_name(): l1_mean}


class L2Loss(MultiLoss):
    def get_name(self):
        return 'L2Loss'

    def compute_loss(self, pred, gt):
        _, l2_mean = loss_sums(pred, gt)
        return l2_mean, {self.get_name(): l2_mean}


if __name__ == "__main__":
    key = jax.random.PRNGKey(0)
    k1, k2 = jax.random.split(key)

    # Small shapes consistent with an image-loss module: batch=2, channels=4, 16x16.
    pred = jax.random.normal(k1, (2, 4, 16, 16), dtype=jnp.float32)
    gt = jax.random.normal(k2, (2, 4, 16, 16), dtype=jnp.float32)

    d = pred - gt
    ref_l1 = jnp.mean(jnp.abs(d))
    ref_l2 = jnp.mean(d * d)

    # 1) Exercise the Pallas kernel directly (bypass the small-input fast path).
    l1p, l2p = jax.block_until_ready(loss_sums(pred, gt, force_pallas=True))
    assert jnp.allclose(l1p, ref_l1, rtol=1e-5, atol=1e-6), (float(l1p), float(ref_l1))
    assert jnp.allclose(l2p, ref_l2, rtol=1e-5, atol=1e-6), (float(l2p), float(ref_l2))

    # 2) MultiLoss combination: loss = L2Loss() + 0.1*L1Loss().
    criterion = L2Loss() + 0.1 * L1Loss()
    loss, details, monitoring = criterion(pred, gt)
    loss = jax.block_until_ready(loss)
    # Per the original forward() semantics only the first term contributes.
    assert loss.ndim == 0
    assert jnp.allclose(loss, ref_l2, rtol=1e-5, atol=1e-6), (float(loss), float(ref_l2))
    assert 'L2Loss' in details and monitoring is None

    # 3) Ragged shape (n not multiple of 128, rows not multiple of tile_rows):
    #    exercises the pad + boundary-mask branch, forced through Pallas.
    p2 = jax.random.normal(k1, (3, 5, 37, 7), dtype=jnp.float32)
    g2 = jax.random.normal(k2, (3, 5, 37, 7), dtype=jnp.float32)
    l1b, l2b = jax.block_until_ready(loss_sums(p2, g2, force_pallas=True))
    d2 = p2 - g2
    assert jnp.allclose(l1b, jnp.mean(jnp.abs(d2)), rtol=1e-5, atol=1e-6)
    assert jnp.allclose(l2b, jnp.mean(d2 * d2), rtol=1e-5, atol=1e-6)

    # 4) Multi-tile reduction path (several reduction steps per core).
    p3 = jax.random.normal(k1, (2, 4, 256, 256), dtype=jnp.float32)
    g3 = jax.random.normal(k2, (2, 4, 256, 256), dtype=jnp.float32)
    l1c, l2c = jax.block_until_ready(loss_sums(p3, g3, force_pallas=True))
    d3 = p3 - g3
    assert jnp.allclose(l1c, jnp.mean(jnp.abs(d3)), rtol=1e-4, atol=1e-5)
    assert jnp.allclose(l2c, jnp.mean(d3 * d3), rtol=1e-4, atol=1e-5)

    print("KERNEL_OK")
</pallas_src>

<mosaic_0001>
module attributes {stable_mosaic.version = 11 : i64} {
  func.func @kernel(%arg0: i32, %arg1: i32, %arg2: memref<16x128xf32, #tpu.memory_space<vmem>>, %arg3: memref<16x128xf32, #tpu.memory_space<vmem>>, %arg4: memref<1x2x8x128xf32, #tpu.memory_space<vmem>>, %arg5: memref<2x8x128xf32, #tpu.memory_space<vmem>>) attributes {dimension_semantics = [#tpu.dimension_semantics<parallel>, #tpu.dimension_semantics<arbitrary>], iteration_bounds = array<i64: 1, 1>, scalar_prefetch = 0 : i64, scratch_operands = 1 : i64, tpu.core_type = #tpu.core_type<tc>, window_params = [{transform_indices = @transform_0, window_bounds = array<i64: 16, 128>}, {transform_indices = @transform_1, window_bounds = array<i64: 16, 128>}, {transform_indices = @transform_2, window_bounds = array<i64: 1, 2, 8, 128>}]} {
    %c0_i32 = arith.constant 0 : i32
    %0 = arith.cmpi eq, %arg1, %c0_i32 : i32
    %1 = arith.extui %0 : i1 to i32
    %c0_i32_0 = arith.constant 0 : i32
    %2 = arith.cmpi ne, %1, %c0_i32_0 : i32
    scf.if %2 {
      %cst_18 = arith.constant 0.000000e+00 : f32
      %27 = vector.broadcast %cst_18 : f32 to vector<2x8x128xf32>
      %c0_19 = arith.constant 0 : index
      %c0_20 = arith.constant 0 : index
      %c0_21 = arith.constant 0 : index
      %28 = vector.load %arg5[%c0_19, %c0_20, %c0_21] : memref<2x8x128xf32, #tpu.memory_space<vmem>>, vector<2x8x128xf32>
      tpu.vector_store %arg5[%c0_19, %c0_20, %c0_21], %27 {strides = array<i32>} : memref<2x8x128xf32, #tpu.memory_space<vmem>>, vector<2x8x128xf32>,
    } else {
    }
    %c0 = arith.constant 0 : index
    %c0_1 = arith.constant 0 : index
    %3 = vector.load %arg2[%c0, %c0_1] : memref<16x128xf32, #tpu.memory_space<vmem>>, vector<16x128xf32>
    %c0_2 = arith.constant 0 : index
    %c0_3 = arith.constant 0 : index
    %4 = vector.load %arg3[%c0_2, %c0_3] : memref<16x128xf32, #tpu.memory_space<vmem>>, vector<16x128xf32>
    %5 = arith.subf %3, %4 : vector<16x128xf32>
    %c0_4 = arith.constant 0 : index
    %c0_5 = arith.constant 0 : index
    %c0_6 = arith.constant 0 : index
    %6 = vector.load %arg5[%c0_4, %c0_5, %c0_6] : memref<2x8x128xf32, #tpu.memory_space<vmem>>, vector<1x8x128xf32>
    %7 = vector.shape_cast %6 : vector<1x8x128xf32> to vector<8x128xf32>
    %8 = math.absf %5 : vector<16x128xf32>
    %9 = vector.shape_cast %8 : vector<16x128xf32> to vector<2x8x128xf32>
    %cst = arith.constant dense<0.000000e+00> : vector<8x128xf32>
    %10 = vector.multi_reduction <add>, %9, %cst [0] : vector<2x8x128xf32> to vector<8x128xf32>
    %11 = arith.addf %7, %10 : vector<8x128xf32>
    %c0_7 = arith.constant 0 : index
    %c0_8 = arith.constant 0 : index
    %c0_9 = arith.constant 0 : index
    %12 = vector.load %arg5[%c0_7, %c0_8, %c0_9] : memref<2x8x128xf32, #tpu.memory_space<vmem>>, vector<1x8x128xf32>
    %13 = vector.shape_cast %12 : vector<1x8x128xf32> to vector<8x128xf32>
    %14 = vector.shape_cast %11 : vector<8x128xf32> to vector<1x8x128xf32>
    tpu.vector_store %arg5[%c0_7, %c0_8, %c0_9], %14 {strides = array<i32>} : memref<2x8x128xf32, #tpu.memory_space<vmem>>, vector<1x8x128xf32>,
    %c1 = arith.constant 1 : index
    %c0_10 = arith.constant 0 : index
    %c0_11 = arith.constant 0 : index
    %15 = vector.load %arg5[%c1, %c0_10, %c0_11] : memref<2x8x128xf32, #tpu.memory_space<vmem>>, vector<1x8x128xf32>
    %16 = vector.shape_cast %15 : vector<1x8x128xf32> to vector<8x128xf32>
    %17 = arith.mulf %5, %5 : vector<16x128xf32>
    %18 = vector.shape_cast %17 : vector<16x128xf32> to vector<2x8x128xf32>
    %cst_12 = arith.constant dense<0.000000e+00> : vector<8x128xf32>
    %19 = vector.multi_reduction <add>, %18, %cst_12 [0] : vector<2x8x128xf32> to vector<8x128xf32>
    %20 = arith.addf %16, %19 : vector<8x128xf32>
    %c1_13 = arith.constant 1 : index
    %c0_14 = arith.constant 0 : index
    %c0_15 = arith.constant 0 : index
    %21 = vector.load %arg5[%c1_13, %c0_14, %c0_15] : memref<2x8x128xf32, #tpu.memory_space<vmem>>, vector<1x8x128xf32>
    %22 = vector.shape_cast %21 : vector<1x8x128xf32> to vector<8x128xf32>
    %23 = vector.shape_cast %20 : vector<8x128xf32> to vector<1x8x128xf32>
    tpu.vector_store %arg5[%c1_13, %c0_14, %c0_15], %23 {strides = array<i32>} : memref<2x8x128xf32, #tpu.memory_space<vmem>>, vector<1x8x128xf32>,
    %c0_i32_16 = arith.constant 0 : i32
    %24 = arith.cmpi eq, %arg1, %c0_i32_16 : i32
    %25 = arith.extui %24 : i1 to i32
    %c0_i32_17 = arith.constant 0 : i32
    %26 = arith.cmpi ne, %25, %c0_i32_17 : i32
    scf.if %26 {
      %c0_18 = arith.constant 0 : index
      %c0_19 = arith.constant 0 : index
      %c0_20 = arith.constant 0 : index
      %27 = vector.load %arg5[%c0_18, %c0_19, %c0_20] : memref<2x8x128xf32, #tpu.memory_space<vmem>>, vector<2x8x128xf32>
      %c0_21 = arith.constant 0 : index
      %c0_22 = arith.constant 0 : index
      %c0_23 = arith.constant 0 : index
      %c0_24 = arith.constant 0 : index
      %28 = vector.load %arg4[%c0_21, %c0_22, %c0_23, %c0_24] : memref<1x2x8x128xf32, #tpu.memory_space<vmem>>, vector<1x2x8x128xf32>
      %29 = vector.shape_cast %28 : vector<1x2x8x128xf32> to vector<2x8x128xf32>
      %30 = vector.shape_cast %27 : vector<2x8x128xf32> to vector<1x2x8x128xf32>
      tpu.vector_store %arg4[%c0_21, %c0_22, %c0_23, %c0_24], %30 {strides = array<i32>} : memref<1x2x8x128xf32, #tpu.memory_space<vmem>>, vector<1x2x8x128xf32>,
    } else {
    }
    return
  }
  func.func @transform_0(%arg0: i32, %arg1: i32) -> (i32, i32) {
    %c1_i32 = arith.constant 1 : i32
    %0 = arith.muli %arg0, %c1_i32 : i32
    %1 = arith.addi %0, %arg1 : i32
    %c0_i32 = arith.constant 0 : i32
    %2 = arith.minsi %1, %c0_i32 : i32
    %c0_i32_0 = arith.constant 0 : i32
    %c0_i32_1 = arith.constant 0 : i32
    return %2, %c0_i32_0 : i32, i32
  }
  func.func @transform_1(%arg0: i32, %arg1: i32) -> (i32, i32) {
    %c1_i32 = arith.constant 1 : i32
    %0 = arith.muli %arg0, %c1_i32 : i32
    %1 = arith.addi %0, %arg1 : i32
    %c0_i32 = arith.constant 0 : i32
    %2 = arith.minsi %1, %c0_i32 : i32
    %c0_i32_0 = arith.constant 0 : i32
    %c0_i32_1 = arith.constant 0 : i32
    return %2, %c0_i32_0 : i32, i32
  }
  func.func @transform_2(%arg0: i32, %arg1: i32) -> (i32, i32, i32, i32) {
    %c0_i32 = arith.constant 0 : i32
    %c0_i32_0 = arith.constant 0 : i32
    %c0_i32_1 = arith.constant 0 : i32
    %c0_i32_2 = arith.constant 0 : i32
    return %arg0, %c0_i32, %c0_i32_0, %c0_i32_1 : i32, i32, i32, i32
  }
}

</mosaic_0001>

<llo_original>
// kernel: _loss_sums_pallas_impl.1
$region0: #{_loss_sums_pallas_impl.1}
  #allocation0 [shape = 'u32[]', space=smem, size = 0x4, offset = 0x4, fixed_abs, tag = 'smem constant byte address 0x4 - core index']
  #allocation1 [shape = 'u32[144,128]{1,0:T(1,128)}', space=vmem, size = 0x12000, scoped, tag = 'internal scratch']
  #allocation2 [shape = 'f32[2,8,128]{2,1,0:T(8,128)}', space=vmem, size = 0x2000, scoped, tag = 'scratch operand']
  %s0 = inlined_call_operand.vmem [shape: f32[16,128], index: 0, kind: input, shape index: {}]
  %s1 = inlined_call_operand.vmem [shape: f32[16,128], index: 1, kind: input, shape index: {}]
  %s2 = inlined_call_operand.vmem [shape: f32[1,2,8,128], index: 2, kind: output, shape index: {}]
  %s3 = sld [smem:[#allocation0]]
  $region26: #{_loss_sums_pallas_impl.1} parent=0
    _
  %s5 = ssub.s32 1, %s3
  %s6 = scalar_select 0, %s5, %s3
  // Predicated region
  $region2: #{_loss_sums_pallas_impl.1} parent=0 // pred_check
    _
  $region3: #{_loss_sums_pallas_impl.1} parent=0 // pred_check_branch
    %8 = sbr.rel (0) target = $region5
  $region4: #{_loss_sums_pallas_impl.1} parent=0 // pred_region
    %s9 = sadd.s32 0, 0
    %p10 = scmp.lt.s32.totalorder %s9, 0
    %s11 = scalar_select %p10, %s9, 0
    %s12 = smul.u32 2, %s11
    %p13 = scmp.lt.s32.totalorder %s12, 1
    %s14 = scalar_select %p13, %s12, 1
    %s15 = smul.addr %s14, 8
    %s16 = scalar_lea.vmem %s0, %s15
    %s17 = sadd.s32 0, 0
    %p18 = scmp.lt.s32.totalorder %s17, 0
    %s19 = scalar_select %p18, %s17, 0
    %s20 = smul.u32 2, %s19
  $region5: #{_loss_sums_pallas_impl.1} parent=0 // pred_fallthru
    _
  // Predicated region
  $region6: #{_loss_sums_pallas_impl.1} parent=0 // pred_check
    _
  $region7: #{_loss_sums_pallas_impl.1} parent=0 // pred_check_branch
    %22 = sbr.rel (0) target = $region9
  $region8: #{_loss_sums_pallas_impl.1} parent=0 // pred_region
    %s23 = sadd.s32 0, 0
    %p24 = scmp.lt.s32.totalorder %s23, 0
    %s25 = scalar_select %p24, %s23, 0
    %s26 = smul.u32 2, %s25
    %p27 = scmp.lt.s32.totalorder %s26, 1
    %s28 = scalar_select %p27, %s26, 1
    %s29 = smul.addr %s28, 8
    %s30 = scalar_lea.vmem %s1, %s29
    %s31 = sadd.s32 0, 0
    %p32 = scmp.lt.s32.totalorder %s31, 0
    %s33 = scalar_select %p32, %s31, 0
    %s34 = smul.u32 2, %s33
  $region9: #{_loss_sums_pallas_impl.1} parent=0 // pred_fallthru
    _
  %s35 = sadd.s32 0, 0
  %p36 = scmp.lt.s32.totalorder %s35, 0
  %s37 = scalar_select %p36, %s35, 0
  %s38 = smul.u32 2, %s37
  %p39 = scmp.lt.s32.totalorder %s38, 1
  %s40 = scalar_select %p39, %s38, 1
  %s41 = smul.addr %s40, 8
  %s42 = scalar_lea.vmem %s0, %s41
  %s43 = sadd.s32 0, 0
  %p44 = scmp.lt.s32.totalorder %s43, 0
  %s45 = scalar_select %p44, %s43, 0
  %s46 = smul.u32 2, %s45
  %p47 = scmp.lt.s32.totalorder %s46, 1
  %s48 = scalar_select %p47, %s46, 1
  %s49 = smul.addr %s48, 8
  %s50 = scalar_lea.vmem %s1, %s49
  %s51 = sadd.s32 0, 0
  %p52 = scmp.lt.s32.totalorder %s51, 0
  %s53 = scalar_select %p52, %s51, 0
  %s54 = smul.u32 2, %s53
  %p55 = scmp.lt.s32.totalorder %s54, 1
  %s56 = scalar_select %p55, %s54, 1
  %s57 = smul.addr %s56, 8
  %s58 = scalar_lea.vmem %s0, %s57
  %s59 = sadd.s32 0, 0
  %p60 = scmp.lt.s32.totalorder %s59, 0
  %s61 = scalar_select %p60, %s59, 0
  %s62 = smul.u32 2, %s61
  %s63 = sadd.s32 0, 0
  %p64 = scmp.lt.s32.totalorder %s63, 0
  %s65 = scalar_select %p64, %s63, 0
  %s66 = smul.u32 2, %s65
  %p67 = scmp.lt.s32.totalorder %s66, 1
  %s68 = scalar_select %p67, %s66, 1
  %s69 = smul.addr %s68, 8
  %s70 = scalar_lea.vmem %s1, %s69
  %s71 = sadd.s32 0, 0
  %p72 = scmp.lt.s32.totalorder %s71, 0
  %s73 = scalar_select %p72, %s71, 0
  %s74 = smul.u32 2, %s73
  %p75 = scmp.eq.s32.totalorder 0, 0
  // Predicated region
  $region10: #{_loss_sums_pallas_impl.1} parent=0 // pred_check
    %p76 = pneg %p75
  $region11: #{_loss_sums_pallas_impl.1} parent=0 // pred_check_branch
    %78 = sbr.rel (%p76) target = $region13
  $region12: #{_loss_sums_pallas_impl.1} parent=0 // pred_region
    %79 = vst [vmem:[#allocation2] sm:$0xff] 0.0
    %80 = vst [vmem:[#allocation2 + $0x8] sm:$0xff] 0.0
  $region13: #{_loss_sums_pallas_impl.1} parent=0 // pred_fallthru
    _
  %v81 = vld [vmem:[%s58] sm:$0xff]
  %v82 = vld [vmem:[%s58 + $0x8] sm:$0xff]
  %v83 = vld [vmem:[%s70] sm:$0xff]
  %v84 = vld [vmem:[%s70 + $0x8] sm:$0xff]
  %v85 = vsub.f32 %v81, %v83
  %v86 = vsub.f32 %v82, %v84
  %v87 = vld [vmem:[#allocation2] sm:$0xff]
  %v88 = vand.u32 2147483647, %v85
  %v89 = vand.u32 2147483647, %v86
  %v90 = vadd.f32 %v88, %v89
  %v91 = vadd.f32 %v87, %v90
  %92 = vst [vmem:[#allocation2] sm:$0xff] %v91
  %s93 = scalar_lea.vmem [#allocation2], 8
  %v94 = vld [vmem:[%s93] sm:$0xff]
  %v95 = vmul.f32 %v85, %v85
  %v96 = vmul.f32 %v86, %v86
  %v97 = vadd.f32 %v95, %v96
  %v98 = vadd.f32 %v94, %v97
  %99 = vst [vmem:[%s93] sm:$0xff] %v98
  // Predicated region
  $region14: #{_loss_sums_pallas_impl.1} parent=0 // pred_check
    %p100 = pneg %p75
  $region15: #{_loss_sums_pallas_impl.1} parent=0 // pred_check_branch
    %102 = sbr.rel (%p100) target = $region17
  $region16: #{_loss_sums_pallas_impl.1} parent=0 // pred_region
    %v103 = vld [vmem:[#allocation2] sm:$0xff]
    %v104 = vld [vmem:[#allocation2 + $0x8] sm:$0xff]
    %105 = vst [vmem:[%s2] sm:$0xff] %v103
    %106 = vst [vmem:[%s2 + $0x8] sm:$0xff] %v104
  $region17: #{_loss_sums_pallas_impl.1} parent=0 // pred_fallthru
    _
  // Predicated region
  $region18: #{_loss_sums_pallas_impl.1} parent=0 // pred_check
    _
  $region19: #{_loss_sums_pallas_impl.1} parent=0 // pred_check_branch
    %108 = sbr.rel (0) target = $region21
  $region20: #{_loss_sums_pallas_impl.1} parent=0 // pred_region
    _
  $region21: #{_loss_sums_pallas_impl.1} parent=0 // pred_fallthru
    _
  // Predicated region
  $region22: #{_loss_sums_pallas_impl.1} parent=0 // pred_check
    _
  $region23: #{_loss_sums_pallas_impl.1} parent=0 // pred_check_branch
    %110 = sbr.rel (0) target = $region25
  $region24: #{_loss_sums_pallas_impl.1} parent=0 // pred_region
    _
  $region25: #{_loss_sums_pallas_impl.1} parent=0 // pred_fallthru
    _

</llo_original>
